<compile_context>
chip_gen: v5e
topology: v5e:2x2
jax: 0.10.0
libtpu: 0.0.40
codegen_flags: <defaults>
</compile_context>

<pallas_src>
import jax
import jax.numpy as jnp
from jax.experimental import pallas as pl
from jax.experimental.pallas import tpu as pltpu

H1 = 256        # first hidden width
H2 = 128        # second hidden width
OUT_PAD = 128   # n_actions (7) padded to a lane-dense output width
NEG_PAD = -1e30  # bias for padded action lanes (argmax-safe)


def _round_up(x, m):
    return (x + m - 1) // m * m


def _default_tm(batch):
    """Static batch-tile choice (depends only on the static batch size).

    v7x has 2 TensorCores per chip -> want >= 2 parallel tiles; v5e / v6e have
    a single TC -> one big tile (fewer ~0.35us grid steps) wins.  For a DQN
    loop, pass an explicit tm and bucket the batch on the caller side so the
    same compiled kernel is reused.
    """
    b8 = _round_up(batch, 8)
    try:
        two_cores = "v7" in jax.devices()[0].device_kind.lower()
    except Exception:  # pragma: no cover - device query is best-effort
        two_cores = False
    if two_cores and batch > 8:
        return _round_up((b8 + 1) // 2, 8)   # ~2 tiles, one per TensorCore
    return min(b8, 512)                      # single grid step for DQN batches


def qnet_kernel(x_ref, w1_ref, b1_ref, w2_ref, b2_ref, w3_ref, b3_ref, o_ref):
    # Fully fused MLP on one batch tile: in-kernel f32->bf16 cast (VPU), bf16
    # matmuls on the MXU with f32 accumulation (Mosaic pads K=147 internally),
    # bias-add + ReLU on the VPU, lane-dense 128-wide store.
    x = x_ref[...].astype(jnp.bfloat16)                               # (TM, 147)
    h1 = jnp.dot(x, w1_ref[...], preferred_element_type=jnp.float32) + b1_ref[...]
    h1 = jnp.maximum(h1, 0.0).astype(jnp.bfloat16)                    # (TM, 256)
    h2 = jnp.dot(h1, w2_ref[...], preferred_element_type=jnp.float32) + b2_ref[...]
    h2 = jnp.maximum(h2, 0.0).astype(jnp.bfloat16)                    # (TM, 128)
    q = jnp.dot(h2, w3_ref[...], preferred_element_type=jnp.float32) + b3_ref[...]
    o_ref[...] = q.astype(o_ref.dtype)                                # (TM, 128)
    # TODO(synk): acting path could fuse argmax over the first n_actions lanes
    # here (emit a (TM, 1) int32 output) to shrink output HBM traffic further.


def prepare_params(params, n_actions):
    """One-time weight padding + bf16 cast, done outside the step loop.

    Only the last layer is padded (out width 7 -> 128).  Padded weight columns
    are zero; padded bias lanes are -1e30 so argmax over the padded output
    never selects a padded action.
    """
    w3 = jnp.zeros((H2, OUT_PAD), jnp.float32).at[:, :n_actions].set(params["w3"])
    b3 = jnp.full((1, OUT_PAD), NEG_PAD, jnp.float32).at[:, :n_actions].set(params["b3"])
    return {
        "w1": params["w1"].astype(jnp.bfloat16),   # (obs_dim, 256), unpadded
        "b1": params["b1"].astype(jnp.float32),
        "w2": params["w2"].astype(jnp.bfloat16),
        "b2": params["b2"].astype(jnp.float32),
        "w3": w3.astype(jnp.bfloat16),
        "b3": b3,
    }


def qnetwork_forward(x, prep, n_actions, *, tm=None, out_dtype=jnp.float32,
                     slice_output=True):
    """x: (B, obs_dim) float32.  prep: output of prepare_params().

    slice_output=False returns the padded lane-dense (b_pad, 128) block (no
    extra post-kernel XLA slice); padded action lanes are ~-1e30 (argmax-safe).
    """
    B, obs_dim = x.shape
    if tm is None:
        tm = _default_tm(B)
    b_pad = _round_up(B, tm)
    if b_pad != B:
        # TODO(synk): for the DQN act path, bucket/pad the batch on the caller
        # side (fixed sizes) so this per-call pad op disappears entirely.
        x = jnp.pad(x, ((0, b_pad - B), (0, 0)))

    flops = 2 * b_pad * (obs_dim * H1 + H1 * H2 + H2 * OUT_PAD)
    bytes_accessed = (
        b_pad * obs_dim * 4                                    # x (f32)
        + (obs_dim * H1 + H1 * H2 + H2 * OUT_PAD) * 2          # bf16 weights
        + (H1 + H2 + OUT_PAD) * 4                              # f32 biases
        + b_pad * OUT_PAD * jnp.dtype(out_dtype).itemsize      # output
    )

    out = pl.pallas_call(
        qnet_kernel,
        out_shape=jax.ShapeDtypeStruct((b_pad, OUT_PAD), out_dtype),
        grid_spec=pltpu.PrefetchScalarGridSpec(
            num_scalar_prefetch=0,
            grid=(b_pad // tm,),
            in_specs=[
                pl.BlockSpec((tm, obs_dim), lambda i: (i, 0)),   # x batch tile
                # Constant index_map -> Mosaic skips re-DMA on revisited blocks,
                # so all weights/biases are fetched once per call and stay resident.
                pl.BlockSpec((obs_dim, H1), lambda i: (0, 0)),
                pl.BlockSpec((1, H1), lambda i: (0, 0)),
                pl.BlockSpec((H1, H2), lambda i: (0, 0)),
                pl.BlockSpec((1, H2), lambda i: (0, 0)),
                pl.BlockSpec((H2, OUT_PAD), lambda i: (0, 0)),
                pl.BlockSpec((1, OUT_PAD), lambda i: (0, 0)),
            ],
            out_specs=pl.BlockSpec((tm, OUT_PAD), lambda i: (i, 0)),
        ),
        compiler_params=pltpu.CompilerParams(
            dimension_semantics=("parallel",)),   # v7x: batch tiles across 2 TCs
        cost_estimate=pl.CostEstimate(
            flops=flops, transcendentals=0, bytes_accessed=bytes_accessed),
    )(x, prep["w1"], prep["b1"], prep["w2"], prep["b2"], prep["w3"], prep["b3"])

    if slice_output:
        return out[:B, :n_actions]
    return out


def init_params(key, obs_dim, n_actions):
    """Deterministic synthetic params (PyTorch-style uniform fan-in init),
    stored as (in_features, out_features) so the kernel computes x @ W + b."""
    def linear(key, fan_in, fan_out):
        kw, kb = jax.random.split(key)
        bound = 1.0 / jnp.sqrt(fan_in)
        w = jax.random.uniform(kw, (fan_in, fan_out), jnp.float32, -bound, bound)
        b = jax.random.uniform(kb, (1, fan_out), jnp.float32, -bound, bound)
        return w, b

    k1, k2, k3 = jax.random.split(key, 3)
    w1, b1 = linear(k1, obs_dim, H1)
    w2, b2 = linear(k2, H1, H2)
    w3, b3 = linear(k3, H2, n_actions)
    return {"w1": w1, "b1": b1, "w2": w2, "b2": b2, "w3": w3, "b3": b3}


def qnetwork_ref(x, p):
    h1 = jnp.maximum(x @ p["w1"] + p["b1"], 0.0)
    h2 = jnp.maximum(h1 @ p["w2"] + p["b2"], 0.0)
    return h2 @ p["w3"] + p["b3"]


if __name__ == "__main__":
    # MiniGrid-like sizes: flattened 7x7x3 observation, 7 discrete actions.
    # Batch of 256 DQN states (one tile on v5e/v6e, two parallel tiles on v7x).
    B, OBS_DIM, N_ACTIONS = 256, 147, 7

    key = jax.random.PRNGKey(0)
    kx, kp = jax.random.split(key)
    x = jax.random.normal(kx, (B, OBS_DIM), dtype=jnp.float32)
    params = init_params(kp, OBS_DIM, N_ACTIONS)
    prep = prepare_params(params, N_ACTIONS)     # one-time pad + bf16 cast

    fwd = jax.jit(
        lambda xx, pp: qnetwork_forward(xx, pp, N_ACTIONS, slice_output=False))
    out_padded = jax.block_until_ready(fwd(x, prep))
    assert out_padded.shape == (B, OUT_PAD)

    ref = qnetwork_ref(x, params)                # f32 reference
    q = out_padded[:, :N_ACTIONS]                # test-harness slice only
    # bf16 weights/activations with f32 accumulation -> ~1e-2 level agreement.
    assert jnp.allclose(q, ref, atol=5e-2, rtol=5e-2), float(
        jnp.max(jnp.abs(q - ref)))
    # Padded action lanes are ~-1e30, so argmax over the padded block is safe.
    assert jnp.array_equal(jnp.argmax(out_padded, axis=-1),
                           jnp.argmax(q, axis=-1))

    print("KERNEL_OK")
</pallas_src>

<mosaic_0001>
module attributes {stable_mosaic.version = 11 : i64} {
  func.func @qnet_kernel(%arg0: i32, %arg1: memref<256x147xf32, #tpu.memory_space<vmem>>, %arg2: memref<147x256xbf16, #tpu.memory_space<vmem>>, %arg3: memref<1x256xf32, #tpu.memory_space<vmem>>, %arg4: memref<256x128xbf16, #tpu.memory_space<vmem>>, %arg5: memref<1x128xf32, #tpu.memory_space<vmem>>, %arg6: memref<128x128xbf16, #tpu.memory_space<vmem>>, %arg7: memref<1x128xf32, #tpu.memory_space<vmem>>, %arg8: memref<256x128xf32, #tpu.memory_space<vmem>>) attributes {dimension_semantics = [#tpu.dimension_semantics<parallel>], iteration_bounds = array<i64: 1>, scalar_prefetch = 0 : i64, scratch_operands = 0 : i64, tpu.core_type = #tpu.core_type<tc>, window_params = [{transform_indices = @transform_0, window_bounds = array<i64: 256, 147>}, {pipeline_mode = #tpu.pipeline_mode<synchronous>, transform_indices = @transform_1, window_bounds = array<i64: 147, 256>}, {pipeline_mode = #tpu.pipeline_mode<synchronous>, transform_indices = @transform_2, window_bounds = array<i64: 1, 256>}, {pipeline_mode = #tpu.pipeline_mode<synchronous>, transform_indices = @transform_3, window_bounds = array<i64: 256, 128>}, {pipeline_mode = #tpu.pipeline_mode<synchronous>, transform_indices = @transform_4, window_bounds = array<i64: 1, 128>}, {pipeline_mode = #tpu.pipeline_mode<synchronous>, transform_indices = @transform_5, window_bounds = array<i64: 128, 128>}, {pipeline_mode = #tpu.pipeline_mode<synchronous>, transform_indices = @transform_6, window_bounds = array<i64: 1, 128>}, {transform_indices = @transform_7, window_bounds = array<i64: 256, 128>}]} {
    %c0 = arith.constant 0 : index
    %c0_0 = arith.constant 0 : index
    %0 = vector.load %arg1[%c0, %c0_0] : memref<256x147xf32, #tpu.memory_space<vmem>>, vector<256x147xf32>
    %1 = arith.truncf %0 : vector<256x147xf32> to vector<256x147xbf16>
    %c0_1 = arith.constant 0 : index
    %c0_2 = arith.constant 0 : index
    %2 = vector.load %arg2[%c0_1, %c0_2] : memref<147x256xbf16, #tpu.memory_space<vmem>>, vector<147x256xbf16>
    %cst = arith.constant dense<0.000000e+00> : vector<256x256xf32>
    %3 = tpu.matmul %1, %2, %cst {dimension_numbers = #tpu.dot_dimension_numbers<[1], [0], [0], [1], [0, 0, 1, 1], [], []>} : vector<256x147xbf16>, vector<147x256xbf16>, vector<256x256xf32> -> vector<256x256xf32>
    %c0_3 = arith.constant 0 : index
    %c0_4 = arith.constant 0 : index
    %4 = vector.load %arg3[%c0_3, %c0_4] : memref<1x256xf32, #tpu.memory_space<vmem>>, vector<1x256xf32>
    %5 = vector.broadcast %4 : vector<1x256xf32> to vector<256x256xf32>
    %6 = arith.addf %3, %5 : vector<256x256xf32>
    %cst_5 = arith.constant 0.000000e+00 : f32
    %7 = vector.broadcast %cst_5 : f32 to vector<256x256xf32>
    %8 = arith.maximumf %6, %7 : vector<256x256xf32>
    %9 = arith.truncf %8 : vector<256x256xf32> to vector<256x256xbf16>
    %c0_6 = arith.constant 0 : index
    %c0_7 = arith.constant 0 : index
    %10 = vector.load %arg4[%c0_6, %c0_7] : memref<256x128xbf16, #tpu.memory_space<vmem>>, vector<256x128xbf16>
    %cst_8 = arith.constant dense<0.000000e+00> : vector<256x128xf32>
    %11 = tpu.matmul %9, %10, %cst_8 {dimension_numbers = #tpu.dot_dimension_numbers<[1], [0], [0], [1], [0, 0, 1, 1], [], []>} : vector<256x256xbf16>, vector<256x128xbf16>, vector<256x128xf32> -> vector<256x128xf32>
    %c0_9 = arith.constant 0 : index
    %c0_10 = arith.constant 0 : index
    %12 = vector.load %arg5[%c0_9, %c0_10] : memref<1x128xf32, #tpu.memory_space<vmem>>, vector<1x128xf32>
    %13 = vector.broadcast %12 : vector<1x128xf32> to vector<256x128xf32>
    %14 = arith.addf %11, %13 : vector<256x128xf32>
    %cst_11 = arith.constant 0.000000e+00 : f32
    %15 = vector.broadcast %cst_11 : f32 to vector<256x128xf32>
    %16 = arith.maximumf %14, %15 : vector<256x128xf32>
    %17 = arith.truncf %16 : vector<256x128xf32> to vector<256x128xbf16>
    %c0_12 = arith.constant 0 : index
    %c0_13 = arith.constant 0 : index
    %18 = vector.load %arg6[%c0_12, %c0_13] : memref<128x128xbf16, #tpu.memory_space<vmem>>, vector<128x128xbf16>
    %cst_14 = arith.constant dense<0.000000e+00> : vector<256x128xf32>
    %19 = tpu.matmul %17, %18, %cst_14 {dimension_numbers = #tpu.dot_dimension_numbers<[1], [0], [0], [1], [0, 0, 1, 1], [], []>} : vector<256x128xbf16>, vector<128x128xbf16>, vector<256x128xf32> -> vector<256x128xf32>
    %c0_15 = arith.constant 0 : index
    %c0_16 = arith.constant 0 : index
    %20 = vector.load %arg7[%c0_15, %c0_16] : memref<1x128xf32, #tpu.memory_space<vmem>>, vector<1x128xf32>
    %21 = vector.broadcast %20 : vector<1x128xf32> to vector<256x128xf32>
    %22 = arith.addf %19, %21 : vector<256x128xf32>
    %c0_17 = arith.constant 0 : index
    %c0_18 = arith.constant 0 : index
    %23 = vector.load %arg8[%c0_17, %c0_18] : memref<256x128xf32, #tpu.memory_space<vmem>>, vector<256x128xf32>
    tpu.vector_store %arg8[%c0_17, %c0_18], %22 {strides = array<i32>} : memref<256x128xf32, #tpu.memory_space<vmem>>, vector<256x128xf32>,
    return
  }
  func.func @transform_0(%arg0: i32) -> (i32, i32) {
    %c0_i32 = arith.constant 0 : i32
    %c0_i32_0 = arith.constant 0 : i32
    return %arg0, %c0_i32 : i32, i32
  }
  func.func @transform_1(%arg0: i32) -> (i32, i32) {
    %c0_i32 = arith.constant 0 : i32
    %c0_i32_0 = arith.constant 0 : i32
    %c0_i32_1 = arith.constant 0 : i32
    return %c0_i32, %c0_i32_0 : i32, i32
  }
  func.func @transform_2(%arg0: i32) -> (i32, i32) {
    %c0_i32 = arith.constant 0 : i32
    %c0_i32_0 = arith.constant 0 : i32
    %c0_i32_1 = arith.constant 0 : i32
    return %c0_i32, %c0_i32_0 : i32, i32
  }
  func.func @transform_3(%arg0: i32) -> (i32, i32) {
    %c0_i32 = arith.constant 0 : i32
    %c0_i32_0 = arith.constant 0 : i32
    %c0_i32_1 = arith.constant 0 : i32
    return %c0_i32, %c0_i32_0 : i32, i32
  }
  func.func @transform_4(%arg0: i32) -> (i32, i32) {
    %c0_i32 = arith.constant 0 : i32
    %c0_i32_0 = arith.constant 0 : i32
    %c0_i32_1 = arith.constant 0 : i32
    return %c0_i32, %c0_i32_0 : i32, i32
  }
  func.func @transform_5(%arg0: i32) -> (i32, i32) {
    %c0_i32 = arith.constant 0 : i32
    %c0_i32_0 = arith.constant 0 : i32
    %c0_i32_1 = arith.constant 0 : i32
    return %c0_i32, %c0_i32_0 : i32, i32
  }
  func.func @transform_6(%arg0: i32) -> (i32, i32) {
    %c0_i32 = arith.constant 0 : i32
    %c0_i32_0 = arith.constant 0 : i32
    %c0_i32_1 = arith.constant 0 : i32
    return %c0_i32, %c0_i32_0 : i32, i32
  }
  func.func @transform_7(%arg0: i32) -> (i32, i32) {
    %c0_i32 = arith.constant 0 : i32
    %c0_i32_0 = arith.constant 0 : i32
    return %arg0, %c0_i32 : i32, i32
  }
}

</mosaic_0001>

<llo_original>
// kernel: _lambda_.1
$region0: #{_lambda_.1}
  #allocation0 [shape = 'u32[]', space=smem, size = 0x4, offset = 0x4, fixed_abs, tag = 'smem constant byte address 0x4 - core index']
  #allocation1 [shape = 'u32[72,128]{1,0:T(1,128)}', space=vmem, size = 0x9000, scoped, tag = 'internal scratch']
  %s0 = inlined_call_operand.vmem [shape: f32[256,147], index: 0, kind: input, shape index: {}]
  %s1 = inlined_call_operand.vmem [shape: bf16[147,256], index: 1, kind: input, shape index: {}]
  %s2 = inlined_call_operand.vmem [shape: f32[1,256], index: 2, kind: input, shape index: {}]
  %s3 = inlined_call_operand.vmem [shape: bf16[256,128], index: 3, kind: input, shape index: {}]
  %s4 = inlined_call_operand.vmem [shape: f32[1,128], index: 4, kind: input, shape index: {}]
  %s5 = inlined_call_operand.vmem [shape: bf16[128,128], index: 5, kind: input, shape index: {}]
  %s6 = inlined_call_operand.vmem [shape: f32[1,128], index: 6, kind: input, shape index: {}]
  %s7 = inlined_call_operand.hbm [shape: f32[256,128], index: 7, kind: output, shape index: {}]
  %s8 = sld [smem:[#allocation0]]
  $region38: #{_lambda_.1} parent=0
    _
  %s10 = ssub.s32 1, %s8
  %s11 = scalar_select 0, %s10, %s8
  $region1: #{_lambda_.1} parent=0
    #allocation2 [shape = 'u8[131072]{0}', space=vmem, size = 0x20000, scoped, tag = 'output window, operand 0, single buffered']
    #allocation3 [shape = 's32[1]{0}', space=sflag, size = 0x4, scoped, tag = 'scoped memory for _lambda_.1']
    %12 = vsyncpa [#allocation3], 0
    // Predicated region
    $region2: #{_lambda_.1} parent=1 // pred_check
      _
    $region3: #{_lambda_.1} parent=1 // pred_check_branch
      %14 = sbr.rel (0) target = $region5
    $region4: #{_lambda_.1} parent=1 // pred_region
      _
    $region5: #{_lambda_.1} parent=1 // pred_fallthru
      _
    // Predicated region
    $region6: #{_lambda_.1} parent=1 // pred_check
      _
    $region7: #{_lambda_.1} parent=1 // pred_check_branch
      %16 = sbr.rel (0) target = $region9
    $region8: #{_lambda_.1} parent=1 // pred_region
      _
    $region9: #{_lambda_.1} parent=1 // pred_fallthru
      _
    // Predicated region
    $region10: #{_lambda_.1} parent=1 // pred_check
      _
    $region11: #{_lambda_.1} parent=1 // pred_check_branch
      %18 = sbr.rel (0) target = $region13
    $region12: #{_lambda_.1} parent=1 // pred_region
      _
    $region13: #{_lambda_.1} parent=1 // pred_fallthru
      _
    // Predicated region
    $region14: #{_lambda_.1} parent=1 // pred_check
      _
    $region15: #{_lambda_.1} parent=1 // pred_check_branch
      %20 = sbr.rel (0) target = $region17
    $region16: #{_lambda_.1} parent=1 // pred_region
      _
    $region17: #{_lambda_.1} parent=1 // pred_fallthru
      _
    // Predicated region
    $region18: #{_lambda_.1} parent=1 // pred_check
      _
    $region19: #{_lambda_.1} parent=1 // pred_check_branch
      %22 = sbr.rel (0) target = $region21
    $region20: #{_lambda_.1} parent=1 // pred_region
      _
    $region21: #{_lambda_.1} parent=1 // pred_fallthru
      _
    // Predicated region
    $region22: #{_lambda_.1} parent=1 // pred_check
      _
    $region23: #{_lambda_.1} parent=1 // pred_check_branch
      %24 = sbr.rel (0) target = $region25
    $region24: #{_lambda_.1} parent=1 // pred_region
      _
    $region25: #{_lambda_.1} parent=1 // pred_fallthru
      _
    // Predicated region
    $region26: #{_lambda_.1} parent=1 // pred_check
      _
    $region27: #{_lambda_.1} parent=1 // pred_check_branch
      %26 = sbr.rel (0) target = $region29
    $region28: #{_lambda_.1} parent=1 // pred_region
      _
    $region29: #{_lambda_.1} parent=1 // pred_fallthru
      _
    %v28 = vld [vmem:[%s0] sm:$0xff]
    %v29 = vld [vmem:[%s0 + $0x8] sm:$0xff]
    %v30 = vld [vmem:[%s0 + $0x10] sm:$0xff]
    %v31 = vld [vmem:[%s0 + $0x18] sm:$0xff]
    %v32 = vld [vmem:[%s0 + $0x20] sm:$0xff]
    %v33 = vld [vmem:[%s0 + $0x28] sm:$0xff]
    %v34 = vld [vmem:[%s0 + $0x30] sm:$0xff]
    %v35 = vld [vmem:[%s0 + $0x38] sm:$0xff]
    %v36 = vld [vmem:[%s0 + $0x40] sm:$0xff]
    %v37 = vld [vmem:[%s0 + $0x48] sm:$0xff]
    %v38 = vld [vmem:[%s0 + $0x50] sm:$0xff]
    %v39 = vld [vmem:[%s0 + $0x58] sm:$0xff]
    %v40 = vld [vmem:[%s0 + $0x60] sm:$0xff]
    %v41 = vld [vmem:[%s0 + $0x68] sm:$0xff]
    %v42 = vld [vmem:[%s0 + $0x70] sm:$0xff]
    %v43 = vld [vmem:[%s0 + $0x78] sm:$0xff]
    %v44 = vld [vmem:[%s0 + $0x80] sm:$0xff]
    %v45 = vld [vmem:[%s0 + $0x88] sm:$0xff]
    %v46 = vld [vmem:[%s0 + $0x90] sm:$0xff]
    %v47 = vld [vmem:[%s0 + $0x98] sm:$0xff]
    %v48 = vld [vmem:[%s0 + $0xa0] sm:$0xff]
    %v49 = vld [vmem:[%s0 + $0xa8] sm:$0xff]
    %v50 = vld [vmem:[%s0 + $0xb0] sm:$0xff]
    %v51 = vld [vmem:[%s0 + $0xb8] sm:$0xff]
    %v52 = vld [vmem:[%s0 + $0xc0] sm:$0xff]
    %v53 = vld [vmem:[%s0 + $0xc8] sm:$0xff]
    %v54 = vld [vmem:[%s0 + $0xd0] sm:$0xff]
    %v55 = vld [vmem:[%s0 + $0xd8] sm:$0xff]
    %v56 = vld [vmem:[%s0 + $0xe0] sm:$0xff]
    %v57 = vld [vmem:[%s0 + $0xe8] sm:$0xff]
    %v58 = vld [vmem:[%s0 + $0xf0] sm:$0xff]
    %v59 = vld [vmem:[%s0 + $0xf8] sm:$0xff]
    %v60 = vld [vmem:[%s0 + $0x100] sm:$0xff]
    %v61 = vld [vmem:[%s0 + $0x108] sm:$0xff]
    %v62 = vld [vmem:[%s0 + $0x110] sm:$0xff]
    %v63 = vld [vmem:[%s0 + $0x118] sm:$0xff]
    %v64 = vld [vmem:[%s0 + $0x120] sm:$0xff]
    %v65 = vld [vmem:[%s0 + $0x128] sm:$0xff]
    %v66 = vld [vmem:[%s0 + $0x130] sm:$0xff]
    %v67 = vld [vmem:[%s0 + $0x138] sm:$0xff]
    %v68 = vld [vmem:[%s0 + $0x140] sm:$0xff]
    %v69 = vld [vmem:[%s0 + $0x148] sm:$0xff]
    %v70 = vld [vmem:[%s0 + $0x150] sm:$0xff]
    %v71 = vld [vmem:[%s0 + $0x158] sm:$0xff]
    %v72 = vld [vmem:[%s0 + $0x160] sm:$0xff]
    %v73 = vld [vmem:[%s0 + $0x168] sm:$0xff]
    %v74 = vld [vmem:[%s0 + $0x170] sm:$0xff]
    %v75 = vld [vmem:[%s0 + $0x178] sm:$0xff]
    %v76 = vld [vmem:[%s0 + $0x180] sm:$0xff]
    %v77 = vld [vmem:[%s0 + $0x188] sm:$0xff]
    %v78 = vld [vmem:[%s0 + $0x190] sm:$0xff]
    %v79 = vld [vmem:[%s0 + $0x198] sm:$0xff]
    %v80 = vld [vmem:[%s0 + $0x1a0] sm:$0xff]
    %v81 = vld [vmem:[%s0 + $0x1a8] sm:$0xff]
    %v82 = vld [vmem:[%s0 + $0x1b0] sm:$0xff]
    %v83 = vld [vmem:[%s0 + $0x1b8] sm:$0xff]
    %v84 = vld [vmem:[%s0 + $0x1c0] sm:$0xff]
    %v85 = vld [vmem:[%s0 + $0x1c8] sm:$0xff]
    %v86 = vld [vmem:[%s0 + $0x1d0] sm:$0xff]
    %v87 = vld [vmem:[%s0 + $0x1d8] sm:$0xff]
    %v88 = vld [vmem:[%s0 + $0x1e0] sm:$0xff]
    %v89 = vld [vmem:[%s0 + $0x1e8] sm:$0xff]
    %v90 = vld [vmem:[%s0 + $0x1f0] sm:$0xff]
    %v91 = vld [vmem:[%s0 + $0x1f8] sm:$0xff]
    %v92 = vpack.c.bf16 %v30, %v28
    %v93 = vpack.c.bf16 %v31, %v29
    %v94 = vpack.c.bf16 %v34, %v32
    %v95 = vpack.c.bf16 %v35, %v33
    %v96 = vpack.c.bf16 %v38, %v36
    %v97 = vpack.c.bf16 %v39, %v37
    %v98 = vpack.c.bf16 %v42, %v40
    %v99 = vpack.c.bf16 %v43, %v41
    %v100 = vpack.c.bf16 %v46, %v44
    %v101 = vpack.c.bf16 %v47, %v45
    %v102 = vpack.c.bf16 %v50, %v48
    %v103 = vpack.c.bf16 %v51, %v49
    %v104 = vpack.c.bf16 %v54, %v52
    %v105 = vpack.c.bf16 %v55, %v53
    %v106 = vpack.c.bf16 %v58, %v56
    %v107 = vpack.c.bf16 %v59, %v57
    %v108 = vpack.c.bf16 %v62, %v60
    %v109 = vpack.c.bf16 %v63, %v61
    %v110 = vpack.c.bf16 %v66, %v64
    %v111 = vpack.c.bf16 %v67, %v65
    %v112 = vpack.c.bf16 %v70, %v68
    %v113 = vpack.c.bf16 %v71, %v69
    %v114 = vpack.c.bf16 %v74, %v72
    %v115 = vpack.c.bf16 %v75, %v73
    %v116 = vpack.c.bf16 %v78, %v76
    %v117 = vpack.c.bf16 %v79, %v77
    %v118 = vpack.c.bf16 %v82, %v80
    %v119 = vpack.c.bf16 %v83, %v81
    %v120 = vpack.c.bf16 %v86, %v84
    %v121 = vpack.c.bf16 %v87, %v85
    %v122 = vpack.c.bf16 %v90, %v88
    %v123 = vpack.c.bf16 %v91, %v89
    %v124 = vld [vmem:[%s1] sm:$0xff]
    %v125 = vld [vmem:[%s1 + $0x8] sm:$0xff]
    %v126 = vld [vmem:[%s1 + $0x10] sm:$0xff]
    %v127 = vld [vmem:[%s1 + $0x18] sm:$0xff]
    %v128 = vld [vmem:[%s1 + $0x20] sm:$0xff]
    %v129 = vld [vmem:[%s1 + $0x28] sm:$0xff]
    %v130 = vld [vmem:[%s1 + $0x30] sm:$0xff]
    %v131 = vld [vmem:[%s1 + $0x38] sm:$0xff]
    %v132 = vld [vmem:[%s1 + $0x40] sm:$0xff]
    %v133 = vld [vmem:[%s1 + $0x48] sm:$0xff]
    %v134 = vld [vmem:[%s1 + $0x50] sm:$0xff]
    %v135 = vld [vmem:[%s1 + $0x58] sm:$0xff]
    %v136 = vld [vmem:[%s1 + $0x60] sm:$0xff]
    %v137 = vld [vmem:[%s1 + $0x68] sm:$0xff]
    %v138 = vld [vmem:[%s1 + $0x70] sm:$0xff]
    %v139 = vld [vmem:[%s1 + $0x78] sm:$0xff]
    %v140 = vld [vmem:[%s1 + $0x80] sm:$0xff]
    %v141 = vld [vmem:[%s1 + $0x88] sm:$0xff]
    %v142 = vld [vmem:[%s1 + $0x90] sm:$0x33]
    %v143 = vld [vmem:[%s2] sm:$0x3]
    %v145 = vperm.slane %v143, 0
    %v146 = vperm.slane %v143, 1
    %v168 = vunpack.c.l.b16 %v124
    %v169 = vunpack.c.h.b16 %v124
    %v170 = vunpack.c.l.b16 %v125
    %v171 = vunpack.c.h.b16 %v125
    %v172 = vunpack.c.l.b16 %v126
    %v173 = vunpack.c.h.b16 %v126
    %v174 = vunpack.c.l.b16 %v127
    %v175 = vunpack.c.h.b16 %v127
    %v176 = vunpack.c.l.b16 %v128
    %v177 = vunpack.c.h.b16 %v128
    %v178 = vunpack.c.l.b16 %v129
    %v179 = vunpack.c.h.b16 %v129
    %v180 = vunpack.c.l.b16 %v130
    %v181 = vunpack.c.h.b16 %v130
    %v182 = vunpack.c.l.b16 %v131
    %v183 = vunpack.c.h.b16 %v131
    %v184 = vunpack.c.l.b16 %v132
    %v185 = vunpack.c.h.b16 %v132
    %v186 = vunpack.c.l.b16 %v133
    %v187 = vunpack.c.h.b16 %v133
    %v188 = vunpack.c.l.b16 %v134
    %v189 = vunpack.c.h.b16 %v134
    %v190 = vunpack.c.l.b16 %v135
    %v191 = vunpack.c.h.b16 %v135
    %v192 = vunpack.c.l.b16 %v136
    %v193 = vunpack.c.h.b16 %v136
    %v194 = vunpack.c.l.b16 %v137
    %v195 = vunpack.c.h.b16 %v137
    %v196 = vunpack.c.l.b16 %v138
    %v197 = vunpack.c.h.b16 %v138
    %v198 = vunpack.c.l.b16 %v139
    %v199 = vunpack.c.h.b16 %v139
    %v200 = vunpack.c.l.b16 %v140
    %v201 = vunpack.c.h.b16 %v140
    %v202 = vunpack.c.l.b16 %v141
    %v203 = vunpack.c.h.b16 %v141
    %v204 = vunpack.c.l.b16 %v142
    %v205 = vunpack.c.h.b16 %v142
    %v206 = vpack.c.b16 %v170, %v168
    %v207 = vpack.c.b16 %v171, %v169
    %v208 = vpack.c.b16 %v174, %v172
    %v209 = vpack.c.b16 %v175, %v173
    %v210 = vpack.c.b16 %v178, %v176
    %v211 = vpack.c.b16 %v179, %v177
    %v212 = vpack.c.b16 %v182, %v180
    %v213 = vpack.c.b16 %v183, %v181
    %v214 = vpack.c.b16 %v186, %v184
    %v215 = vpack.c.b16 %v187, %v185
    %v216 = vpack.c.b16 %v190, %v188
    %v217 = vpack.c.b16 %v191, %v189
    %v218 = vpack.c.b16 %v194, %v192
    %v219 = vpack.c.b16 %v195, %v193
    %v220 = vpack.c.b16 %v198, %v196
    %v221 = vpack.c.b16 %v199, %v197
    %v222 = vpack.c.b16 %v202, %v200
    %v223 = vpack.c.b16 %v203, %v201
    %v224 = vpack.c.b16 %v204, %v204
    %v225 = vpack.c.b16 %v205, %v205
    %vm244 = vcmask 154624
    %v246 = vsel %vm244, %v93, 0
    %v249 = vsel %vm244, %v95, 0
    %v252 = vsel %vm244, %v97, 0
    %v255 = vsel %vm244, %v99, 0
    %v258 = vsel %vm244, %v101, 0
    %v261 = vsel %vm244, %v103, 0
    %v264 = vsel %vm244, %v105, 0
    %v267 = vsel %vm244, %v107, 0
    %v270 = vsel %vm244, %v109, 0
    %v273 = vsel %vm244, %v111, 0
    %v276 = vsel %vm244, %v113, 0
    %v279 = vsel %vm244, %v115, 0
    %v282 = vsel %vm244, %v117, 0
    %v285 = vsel %vm244, %v119, 0
    %v288 = vsel %vm244, %v121, 0
    %v291 = vsel %vm244, %v123, 0
    %vm293 = vcmask 1040384
    %vm294 = vcmask 1041408
    %v295 = vsel %vm293, 4294967295, 65535
    %v296 = vsel %vm294, %v295, 0
    %v298 = vand.u32 %v224, %v296
    %v301 = vand.u32 %v225, %v296
    %303 = vmatpush.bf16.msra.mxu0 %v220
    %304 = vmatpush.bf16.msra.mxu0 %v218
    %305 = vmatpush.bf16.msra.mxu0 %v216
    %306 = vmatpush.bf16.msra.mxu0 %v214
    %307 = vmatpush.bf16.msra.mxu0 %v212
    %308 = vmatpush.bf16.msra.mxu0 %v210
    %309 = vmatpush.bf16.msra.mxu0 %v208
    %310 = vmatpush.bf16.msra.mxu0 %v206
    %311 = vmatmul.bf16.gmra.mxu0 %v92
    %v312 = vpop.f32.mrf.mxu0
    %v313 = vadd.f32 %v145, %v312
    %v314 = vpop.f32.mrf.mxu0
    %v315 = vadd.f32 %v145, %v314
    %316 = vmatmul.bf16.gmra.mxu0 %v94
    %v317 = vpop.f32.mrf.mxu0
    %v318 = vadd.f32 %v145, %v317
    %v319 = vpop.f32.mrf.mxu0
    %v320 = vadd.f32 %v145, %v319
    %321 = vmatmul.bf16.gmra.mxu0 %v96
    %v322 = vpop.f32.mrf.mxu0
    %v323 = vadd.f32 %v145, %v322
    %v324 = vpop.f32.mrf.mxu0
    %v325 = vadd.f32 %v145, %v324
    %326 = vmatmul.bf16.gmra.mxu0 %v98
    %v327 = vpop.f32.mrf.mxu0
    %v328 = vadd.f32 %v145, %v327
    %v329 = vpop.f32.mrf.mxu0
    %v330 = vadd.f32 %v145, %v329
    %331 = vmatmul.bf16.gmra.mxu0 %v100
    %v332 = vpop.f32.mrf.mxu0
    %v333 = vadd.f32 %v145, %v332
    %v334 = vpop.f32.mrf.mxu0
    %v335 = vadd.f32 %v145, %v334
    %336 = vmatmul.bf16.gmra.mxu0 %v102
    %v337 = vpop.f32.mrf.mxu0
    %v338 = vadd.f32 %v145, %v337
    %v339 = vpop.f32.mrf.mxu0
    %v340 = vadd.f32 %v145, %v339
    %341 = vmatmul.bf16.gmra.mxu0 %v104
    %v342 = vpop.f32.mrf.mxu0
    %v343 = vadd.f32 %v145, %v342
    %v344 = vpop.f32.mrf.mxu0
    %v345 = vadd.f32 %v145, %v344
    %346 = vmatmul.bf16.gmra.mxu0 %v106
    %v347 = vpop.f32.mrf.mxu0
    %v348 = vadd.f32 %v145, %v347
    %v349 = vpop.f32.mrf.mxu0
    %v350 = vadd.f32 %v145, %v349
    %351 = vmatmul.bf16.gmra.mxu0 %v108
    %v352 = vpop.f32.mrf.mxu0
    %v353 = vadd.f32 %v145, %v352
    %v354 = vpop.f32.mrf.mxu0
    %v355 = vadd.f32 %v145, %v354
    %356 = vmatmul.bf16.gmra.mxu0 %v110
    %v357 = vpop.f32.mrf.mxu0
    %v358 = vadd.f32 %v145, %v357
    %v359 = vpop.f32.mrf.mxu0
    %v360 = vadd.f32 %v145, %v359
    %361 = vmatmul.bf16.gmra.mxu0 %v112
    %v362 = vpop.f32.mrf.mxu0
    %v363 = vadd.f32 %v145, %v362
    %v364 = vpop.f32.mrf.mxu0
    %v365 = vadd.f32 %v145, %v364
    %366 = vmatmul.bf16.gmra.mxu0 %v114
    %v367 = vpop.f32.mrf.mxu0
    %v368 = vadd.f32 %v145, %v367
    %v369 = vpop.f32.mrf.mxu0
    %v370 = vadd.f32 %v145, %v369
    %371 = vmatmul.bf16.gmra.mxu0 %v116
    %v372 = vpop.f32.mrf.mxu0
    %v373 = vadd.f32 %v145, %v372
    %v374 = vpop.f32.mrf.mxu0
    %v375 = vadd.f32 %v145, %v374
    %376 = vmatmul.bf16.gmra.mxu0 %v118
    %v377 = vpop.f32.mrf.mxu0
    %v378 = vadd.f32 %v145, %v377
    %v379 = vpop.f32.mrf.mxu0
    %v380 = vadd.f32 %v145, %v379
    %381 = vmatmul.bf16.gmra.mxu0 %v120
    %v382 = vpop.f32.mrf.mxu0
    %v383 = vadd.f32 %v145, %v382
    %v384 = vpop.f32.mrf.mxu0
    %v385 = vadd.f32 %v145, %v384
    %386 = vmatmul.bf16.gmra.mxu0 %v122
    %v387 = vpop.f32.mrf.mxu0
    %v388 = vadd.f32 %v145, %v387
    %v389 = vpop.f32.mrf.mxu0
    %v390 = vadd.f32 %v145, %v389
    %391 = vdwg.mxu0
    %392 = vmatpush.bf16.msra.mxu0 0
    %393 = vmatpush.bf16.msra.mxu0 0
    %394 = vmatpush.bf16.msra.mxu0 0
    %395 = vmatpush.bf16.msra.mxu0 0
    %396 = vmatpush.bf16.msra.mxu0 0
    %397 = vmatpush.bf16.msra.mxu0 0
    %398 = vmatpush.bf16.msra.mxu0 %v298
    %399 = vmatpush.bf16.msra.mxu0 %v222
    %400 = vmatmul.bf16.gmra.mxu0 %v246
    %v401 = vpop.f32.mrf.mxu0
    %v402 = vadd.f32 %v313, %v401
    %v403 = vpop.f32.mrf.mxu0
    %v404 = vadd.f32 %v315, %v403
    %405 = vmatmul.bf16.gmra.mxu0 %v249
    %v406 = vpop.f32.mrf.mxu0
    %v407 = vadd.f32 %v318, %v406
    %v408 = vpop.f32.mrf.mxu0
    %v409 = vadd.f32 %v320, %v408
    %410 = vmatmul.bf16.gmra.mxu0 %v252
    %v411 = vpop.f32.mrf.mxu0
    %v412 = vadd.f32 %v323, %v411
    %v413 = vpop.f32.mrf.mxu0
    %v414 = vadd.f32 %v325, %v413
    %415 = vmatmul.bf16.gmra.mxu0 %v255
    %v416 = vpop.f32.mrf.mxu0
    %v417 = vadd.f32 %v328, %v416
    %v418 = vpop.f32.mrf.mxu0
    %v419 = vadd.f32 %v330, %v418
    %420 = vmatmul.bf16.gmra.mxu0 %v258
    %v421 = vpop.f32.mrf.mxu0
    %v422 = vadd.f32 %v333, %v421
    %v423 = vpop.f32.mrf.mxu0
    %v424 = vadd.f32 %v335, %v423
    %425 = vmatmul.bf16.gmra.mxu0 %v261
    %v426 = vpop.f32.mrf.mxu0
    %v427 = vadd.f32 %v338, %v426
    %v428 = vpop.f32.mrf.mxu0
    %v429 = vadd.f32 %v340, %v428
    %430 = vmatmul.bf16.gmra.mxu0 %v264
    %v431 = vpop.f32.mrf.mxu0
    %v432 = vadd.f32 %v343, %v431
    %v433 = vpop.f32.mrf.mxu0
    %v434 = vadd.f32 %v345, %v433
    %435 = vmatmul.bf16.gmra.mxu0 %v267
    %v436 = vpop.f32.mrf.mxu0
    %v437 = vadd.f32 %v348, %v436
    %v438 = vpop.f32.mrf.mxu0
    %v439 = vadd.f32 %v350, %v438
    %440 = vmatmul.bf16.gmra.mxu0 %v270
    %v441 = vpop.f32.mrf.mxu0
    %v442 = vadd.f32 %v353, %v441
    %v443 = vpop.f32.mrf.mxu0
    %v444 = vadd.f32 %v355, %v443
    %445 = vmatmul.bf16.gmra.mxu0 %v273
    %v446 = vpop.f32.mrf.mxu0
    %v447 = vadd.f32 %v358, %v446
    %v448 = vpop.f32.mrf.mxu0
    %v449 = vadd.f32 %v360, %v448
    %450 = vmatmul.bf16.gmra.mxu0 %v276
    %v451 = vpop.f32.mrf.mxu0
    %v452 = vadd.f32 %v363, %v451
    %v453 = vpop.f32.mrf.mxu0
    %v454 = vadd.f32 %v365, %v453
    %455 = vmatmul.bf16.gmra.mxu0 %v279
    %v456 = vpop.f32.mrf.mxu0
    %v457 = vadd.f32 %v368, %v456
    %v458 = vpop.f32.mrf.mxu0
    %v459 = vadd.f32 %v370, %v458
    %460 = vmatmul.bf16.gmra.mxu0 %v282
    %v461 = vpop.f32.mrf.mxu0
    %v462 = vadd.f32 %v373, %v461
    %v463 = vpop.f32.mrf.mxu0
    %v464 = vadd.f32 %v375, %v463
    %465 = vmatmul.bf16.gmra.mxu0 %v285
    %v466 = vpop.f32.mrf.mxu0
    %v467 = vadd.f32 %v378, %v466
    %v468 = vpop.f32.mrf.mxu0
    %v469 = vadd.f32 %v380, %v468
    %470 = vmatmul.bf16.gmra.mxu0 %v288
    %v471 = vpop.f32.mrf.mxu0
    %v472 = vadd.f32 %v383, %v471
    %v473 = vpop.f32.mrf.mxu0
    %v474 = vadd.f32 %v385, %v473
    %475 = vmatmul.bf16.gmra.mxu0 %v291
    %v476 = vpop.f32.mrf.mxu0
    %v477 = vadd.f32 %v388, %v476
    %v478 = vpop.f32.mrf.mxu0
    %v479 = vadd.f32 %v390, %v478
    %480 = vdwg.mxu0
    %481 = vmatpush.bf16.msra.mxu0 %v221
    %482 = vmatpush.bf16.msra.mxu0 %v219
    %483 = vmatpush.bf16.msra.mxu0 %v217
    %484 = vmatpush.bf16.msra.mxu0 %v215
    %485 = vmatpush.bf16.msra.mxu0 %v213
    %486 = vmatpush.bf16.msra.mxu0 %v211
    %487 = vmatpush.bf16.msra.mxu0 %v209
    %488 = vmatpush.bf16.msra.mxu0 %v207
    %489 = vmatmul.bf16.gmra.mxu0 %v92
    %v490 = vpop.f32.mrf.mxu0
    %v491 = vadd.f32 %v146, %v490
    %v492 = vpop.f32.mrf.mxu0
    %v493 = vadd.f32 %v146, %v492
    %494 = vmatmul.bf16.gmra.mxu0 %v94
    %v495 = vpop.f32.mrf.mxu0
    %v496 = vadd.f32 %v146, %v495
    %v497 = vpop.f32.mrf.mxu0
    %v498 = vadd.f32 %v146, %v497
    %499 = vmatmul.bf16.gmra.mxu0 %v96
    %v500 = vpop.f32.mrf.mxu0
    %v501 = vadd.f32 %v146, %v500
    %v502 = vpop.f32.mrf.mxu0
    %v503 = vadd.f32 %v146, %v502
    %504 = vmatmul.bf16.gmra.mxu0 %v98
    %v505 = vpop.f32.mrf.mxu0
    %v506 = vadd.f32 %v146, %v505
    %v507 = vpop.f32.mrf.mxu0
    %v508 = vadd.f32 %v146, %v507
    %509 = vmatmul.bf16.gmra.mxu0 %v100
    %v510 = vpop.f32.mrf.mxu0
    %v511 = vadd.f32 %v146, %v510
    %v512 = vpop.f32.mrf.mxu0
    %v513 = vadd.f32 %v146, %v512
    %514 = vmatmul.bf16.gmra.mxu0 %v102
    %v515 = vpop.f32.mrf.mxu0
    %v516 = vadd.f32 %v146, %v515
    %v517 = vpop.f32.mrf.mxu0
    %v518 = vadd.f32 %v146, %v517
    %519 = vmatmul.bf16.gmra.mxu0 %v104
    %v520 = vpop.f32.mrf.mxu0
    %v521 = vadd.f32 %v146, %v520
    %v522 = vpop.f32.mrf.mxu0
    %v523 = vadd.f32 %v146, %v522
    %524 = vmatmul.bf16.gmra.mxu0 %v106
    %v525 = vpop.f32.mrf.mxu0
    %v526 = vadd.f32 %v146, %v525
    %v527 = vpop.f32.mrf.mxu0
    %v528 = vadd.f32 %v146, %v527
    %529 = vmatmul.bf16.gmra.mxu0 %v108
    %v530 = vpop.f32.mrf.mxu0
    %v531 = vadd.f32 %v146, %v530
    %v532 = vpop.f32.mrf.mxu0
    %v533 = vadd.f32 %v146, %v532
    %534 = vmatmul.bf16.gmra.mxu0 %v110
    %v535 = vpop.f32.mrf.mxu0
    %v536 = vadd.f32 %v146, %v535
    %v537 = vpop.f32.mrf.mxu0
    %v538 = vadd.f32 %v146, %v537
    %539 = vmatmul.bf16.gmra.mxu0 %v112
    %v540 = vpop.f32.mrf.mxu0
    %v541 = vadd.f32 %v146, %v540
    %v542 = vpop.f32.mrf.mxu0
    %v543 = vadd.f32 %v146, %v542
    %544 = vmatmul.bf16.gmra.mxu0 %v114
    %v545 = vpop.f32.mrf.mxu0
    %v546 = vadd.f32 %v146, %v545
    %v547 = vpop.f32.mrf.mxu0
    %v548 = vadd.f32 %v146, %v547
    %549 = vmatmul.bf16.gmra.mxu0 %v116
    %v550 = vpop.f32.mrf.mxu0
    %v551 = vadd.f32 %v146, %v550
    %v552 = vpop.f32.mrf.mxu0
    %v553 = vadd.f32 %v146, %v552
    %554 = vmatmul.bf16.gmra.mxu0 %v118
    %v555 = vpop.f32.mrf.mxu0
    %v556 = vadd.f32 %v146, %v555
    %v557 = vpop.f32.mrf.mxu0
    %v558 = vadd.f32 %v146, %v557
    %559 = vmatmul.bf16.gmra.mxu0 %v120
    %v560 = vpop.f32.mrf.mxu0
    %v561 = vadd.f32 %v146, %v560
    %v562 = vpop.f32.mrf.mxu0
    %v563 = vadd.f32 %v146, %v562
    %564 = vmatmul.bf16.gmra.mxu0 %v122
    %v565 = vpop.f32.mrf.mxu0
    %v566 = vadd.f32 %v146, %v565
    %v567 = vpop.f32.mrf.mxu0
    %v568 = vadd.f32 %v146, %v567
    %569 = vdwg.mxu0
    %570 = vmatpush.bf16.msra.mxu0 0
    %571 = vmatpush.bf16.msra.mxu0 0
    %572 = vmatpush.bf16.msra.mxu0 0
    %573 = vmatpush.bf16.msra.mxu0 0
    %574 = vmatpush.bf16.msra.mxu0 0
    %575 = vmatpush.bf16.msra.mxu0 0
    %576 = vmatpush.bf16.msra.mxu0 %v301
    %577 = vmatpush.bf16.msra.mxu0 %v223
    %578 = vmatmul.bf16.gmra.mxu0 %v246
    %v579 = vpop.f32.mrf.mxu0
    %v580 = vadd.f32 %v491, %v579
    %v581 = vpop.f32.mrf.mxu0
    %v582 = vadd.f32 %v493, %v581
    %583 = vmatmul.bf16.gmra.mxu0 %v249
    %v584 = vpop.f32.mrf.mxu0
    %v585 = vadd.f32 %v496, %v584
    %v586 = vpop.f32.mrf.mxu0
    %v587 = vadd.f32 %v498, %v586
    %588 = vmatmul.bf16.gmra.mxu0 %v252
    %v589 = vpop.f32.mrf.mxu0
    %v590 = vadd.f32 %v501, %v589
    %v591 = vpop.f32.mrf.mxu0
    %v592 = vadd.f32 %v503, %v591
    %593 = vmatmul.bf16.gmra.mxu0 %v255
    %v594 = vpop.f32.mrf.mxu0
    %v595 = vadd.f32 %v506, %v594
    %v596 = vpop.f32.mrf.mxu0
    %v597 = vadd.f32 %v508, %v596
    %598 = vmatmul.bf16.gmra.mxu0 %v258
    %v599 = vpop.f32.mrf.mxu0
    %v600 = vadd.f32 %v511, %v599
    %v601 = vpop.f32.mrf.mxu0
    %v602 = vadd.f32 %v513, %v601
    %603 = vmatmul.bf16.gmra.mxu0 %v261
    %v604 = vpop.f32.mrf.mxu0
    %v605 = vadd.f32 %v516, %v604
    %v606 = vpop.f32.mrf.mxu0
    %v607 = vadd.f32 %v518, %v606
    %608 = vmatmul.bf16.gmra.mxu0 %v264
    %v609 = vpop.f32.mrf.mxu0
    %v610 = vadd.f32 %v521, %v609
    %v611 = vpop.f32.mrf.mxu0
    %v612 = vadd.f32 %v523, %v611
    %613 = vmatmul.bf16.gmra.mxu0 %v267
    %v614 = vpop.f32.mrf.mxu0
    %v615 = vadd.f32 %v526, %v614
    %v616 = vpop.f32.mrf.mxu0
    %v617 = vadd.f32 %v528, %v616
    %618 = vmatmul.bf16.gmra.mxu0 %v270
    %v619 = vpop.f32.mrf.mxu0
    %v620 = vadd.f32 %v531, %v619
    %v621 = vpop.f32.mrf.mxu0
    %v622 = vadd.f32 %v533, %v621
    %623 = vmatmul.bf16.gmra.mxu0 %v273
    %v624 = vpop.f32.mrf.mxu0
    %v625 = vadd.f32 %v536, %v624
    %v626 = vpop.f32.mrf.mxu0
    %v627 = vadd.f32 %v538, %v626
    %628 = vmatmul.bf16.gmra.mxu0 %v276
    %v629 = vpop.f32.mrf.mxu0
    %v630 = vadd.f32 %v541, %v629
    %v631 = vpop.f32.mrf.mxu0
    %v632 = vadd.f32 %v543, %v631
    %633 = vmatmul.bf16.gmra.mxu0 %v279
    %v634 = vpop.f32.mrf.mxu0
    %v635 = vadd.f32 %v546, %v634
    %v636 = vpop.f32.mrf.mxu0
    %v637 = vadd.f32 %v548, %v636
    %638 = vmatmul.bf16.gmra.mxu0 %v282
    %v639 = vpop.f32.mrf.mxu0
    %v640 = vadd.f32 %v551, %v639
    %v641 = vpop.f32.mrf.mxu0
    %v642 = vadd.f32 %v553, %v641
    %643 = vmatmul.bf16.gmra.mxu0 %v285
    %v644 = vpop.f32.mrf.mxu0
    %v645 = vadd.f32 %v556, %v644
    %v646 = vpop.f32.mrf.mxu0
    %v647 = vadd.f32 %v558, %v646
    %648 = vmatmul.bf16.gmra.mxu0 %v288
    %v649 = vpop.f32.mrf.mxu0
    %v650 = vadd.f32 %v561, %v649
    %v651 = vpop.f32.mrf.mxu0
    %v652 = vadd.f32 %v563, %v651
    %653 = vmatmul.bf16.gmra.mxu0 %v291
    %v654 = vpop.f32.mrf.mxu0
    %v655 = vadd.f32 %v566, %v654
    %v656 = vpop.f32.mrf.mxu0
    %v657 = vadd.f32 %v568, %v656
    %658 = vdwg.mxu0
    %v659 = vmax.f32 %v402, 0.0
    %v660 = vmax.f32 %v580, 0.0
    %v661 = vmax.f32 %v404, 0.0
    %v662 = vmax.f32 %v582, 0.0
    %v663 = vmax.f32 %v407, 0.0
    %v664 = vmax.f32 %v585, 0.0
    %v665 = vmax.f32 %v409, 0.0
    %v666 = vmax.f32 %v587, 0.0
    %v667 = vmax.f32 %v412, 0.0
    %v668 = vmax.f32 %v590, 0.0
    %v669 = vmax.f32 %v414, 0.0
    %v670 = vmax.f32 %v592, 0.0
    %v671 = vmax.f32 %v417, 0.0
    %v672 = vmax.f32 %v595, 0.0
    %v673 = vmax.f32 %v419, 0.0
    %v674 = vmax.f32 %v597, 0.0
    %v675 = vmax.f32 %v422, 0.0
    %v676 = vmax.f32 %v600, 0.0
    %v677 = vmax.f32 %v424, 0.0
    %v678 = vmax.f32 %v602, 0.0
    %v679 = vmax.f32 %v427, 0.0
    %v680 = vmax.f32 %v605, 0.0
    %v681 = vmax.f32 %v429, 0.0
    %v682 = vmax.f32 %v607, 0.0
    %v683 = vmax.f32 %v432, 0.0
    %v684 = vmax.f32 %v610, 0.0
    %v685 = vmax.f32 %v434, 0.0
    %v686 = vmax.f32 %v612, 0.0
    %v687 = vmax.f32 %v437, 0.0
    %v688 = vmax.f32 %v615, 0.0
    %v689 = vmax.f32 %v439, 0.0
    %v690 = vmax.f32 %v617, 0.0
    %v691 = vmax.f32 %v442, 0.0
    %v692 = vmax.f32 %v620, 0.0
    %v693 = vmax.f32 %v444, 0.0
    %v694 = vmax.f32 %v622, 0.0
    %v695 = vmax.f32 %v447, 0.0
    %v696 = vmax.f32 %v625, 0.0
    %v697 = vmax.f32 %v449, 0.0
    %v698 = vmax.f32 %v627, 0.0
    %v699 = vmax.f32 %v452, 0.0
    %v700 = vmax.f32 %v630, 0.0
    %v701 = vmax.f32 %v454, 0.0
    %v702 = vmax.f32 %v632, 0.0
    %v703 = vmax.f32 %v457, 0.0
    %v704 = vmax.f32 %v635, 0.0
    %v705 = vmax.f32 %v459, 0.0
    %v706 = vmax.f32 %v637, 0.0
    %v707 = vmax.f32 %v462, 0.0
    %v708 = vmax.f32 %v640, 0.0
    %v709 = vmax.f32 %v464, 0.0
    %v710 = vmax.f32 %v642, 0.0
    %v711 = vmax.f32 %v467, 0.0
    %v712 = vmax.f32 %v645, 0.0
    %v713 = vmax.f32 %v469, 0.0
    %v714 = vmax.f32 %v647, 0.0
    %v715 = vmax.f32 %v472, 0.0
    %v716 = vmax.f32 %v650, 0.0
    %v717 = vmax.f32 %v474, 0.0
    %v718 = vmax.f32 %v652, 0.0
    %v719 = vmax.f32 %v477, 0.0
    %v720 = vmax.f32 %v655, 0.0
    %v721 = vmax.f32 %v479, 0.0
    %v722 = vmax.f32 %v657, 0.0
    %v723 = vpack.c.bf16 %v661, %v659
    %v724 = vpack.c.bf16 %v662, %v660
    %v725 = vpack.c.bf16 %v665, %v663
    %v726 = vpack.c.bf16 %v666, %v664
    %v727 = vpack.c.bf16 %v669, %v667
    %v728 = vpack.c.bf16 %v670, %v668
    %v729 = vpack.c.bf16 %v673, %v671
    %v730 = vpack.c.bf16 %v674, %v672
    %v731 = vpack.c.bf16 %v677, %v675
    %v732 = vpack.c.bf16 %v678, %v676
    %v733 = vpack.c.bf16 %v681, %v679
    %v734 = vpack.c.bf16 %v682, %v680
    %v735 = vpack.c.bf16 %v685, %v683
    %v736 = vpack.c.bf16 %v686, %v684
    %v737 = vpack.c.bf16 %v689, %v687
    %v738 = vpack.c.bf16 %v690, %v688
    %v739 = vpack.c.bf16 %v693, %v691
    %v740 = vpack.c.bf16 %v694, %v692
    %v741 = vpack.c.bf16 %v697, %v695
    %v742 = vpack.c.bf16 %v698, %v696
    %v743 = vpack.c.bf16 %v701, %v699
    %v744 = vpack.c.bf16 %v702, %v700
    %v745 = vpack.c.bf16 %v705, %v703
    %v746 = vpack.c.bf16 %v706, %v704
    %v747 = vpack.c.bf16 %v709, %v707
    %v748 = vpack.c.bf16 %v710, %v708
    %v749 = vpack.c.bf16 %v713, %v711
    %v750 = vpack.c.bf16 %v714, %v712
    %v751 = vpack.c.bf16 %v717, %v715
    %v752 = vpack.c.bf16 %v718, %v716
    %v753 = vpack.c.bf16 %v721, %v719
    %v754 = vpack.c.bf16 %v722, %v720
    %v755 = vld [vmem:[%s3] sm:$0xf]
    %v756 = vld [vmem:[%s3 + $0x4] sm:$0xf]
    %v757 = vld [vmem:[%s3 + $0x8] sm:$0xf]
    %v758 = vld [vmem:[%s3 + $0xc] sm:$0xf]
    %v759 = vld [vmem:[%s3 + $0x10] sm:$0xf]
    %v760 = vld [vmem:[%s3 + $0x14] sm:$0xf]
    %v761 = vld [vmem:[%s3 + $0x18] sm:$0xf]
    %v762 = vld [vmem:[%s3 + $0x1c] sm:$0xf]
    %v763 = vld [vmem:[%s3 + $0x20] sm:$0xf]
    %v764 = vld [vmem:[%s3 + $0x24] sm:$0xf]
    %v765 = vld [vmem:[%s3 + $0x28] sm:$0xf]
    %v766 = vld [vmem:[%s3 + $0x2c] sm:$0xf]
    %v767 = vld [vmem:[%s3 + $0x30] sm:$0xf]
    %v768 = vld [vmem:[%s3 + $0x34] sm:$0xf]
    %v769 = vld [vmem:[%s3 + $0x38] sm:$0xf]
    %v770 = vld [vmem:[%s3 + $0x3c] sm:$0xf]
    %v771 = vld [vmem:[%s3 + $0x40] sm:$0xf]
    %v772 = vld [vmem:[%s3 + $0x44] sm:$0xf]
    %v773 = vld [vmem:[%s3 + $0x48] sm:$0xf]
    %v774 = vld [vmem:[%s3 + $0x4c] sm:$0xf]
    %v775 = vld [vmem:[%s3 + $0x50] sm:$0xf]
    %v776 = vld [vmem:[%s3 + $0x54] sm:$0xf]
    %v777 = vld [vmem:[%s3 + $0x58] sm:$0xf]
    %v778 = vld [vmem:[%s3 + $0x5c] sm:$0xf]
    %v779 = vld [vmem:[%s3 + $0x60] sm:$0xf]
    %v780 = vld [vmem:[%s3 + $0x64] sm:$0xf]
    %v781 = vld [vmem:[%s3 + $0x68] sm:$0xf]
    %v782 = vld [vmem:[%s3 + $0x6c] sm:$0xf]
    %v783 = vld [vmem:[%s3 + $0x70] sm:$0xf]
    %v784 = vld [vmem:[%s3 + $0x74] sm:$0xf]
    %v785 = vld [vmem:[%s3 + $0x78] sm:$0xf]
    %v786 = vld [vmem:[%s3 + $0x7c] sm:$0xf]
    %v787 = vld [vmem:[%s4] sm:$0x1]
    %v789 = vperm.slane %v787, 0
    %v823 = vunpack.c.l.b16 %v755
    %v824 = vunpack.c.l.b16 %v756
    %v825 = vunpack.c.l.b16 %v757
    %v826 = vunpack.c.l.b16 %v758
    %v827 = vunpack.c.l.b16 %v759
    %v828 = vunpack.c.l.b16 %v760
    %v829 = vunpack.c.l.b16 %v761
    %v830 = vunpack.c.l.b16 %v762
    %v831 = vunpack.c.l.b16 %v763
    %v832 = vunpack.c.l.b16 %v764
    %v833 = vunpack.c.l.b16 %v765
    %v834 = vunpack.c.l.b16 %v766
    %v835 = vunpack.c.l.b16 %v767
    %v836 = vunpack.c.l.b16 %v768
    %v837 = vunpack.c.l.b16 %v769
    %v838 = vunpack.c.l.b16 %v770
    %v839 = vunpack.c.l.b16 %v771
    %v840 = vunpack.c.l.b16 %v772
    %v841 = vunpack.c.l.b16 %v773
    %v842 = vunpack.c.l.b16 %v774
    %v843 = vunpack.c.l.b16 %v775
    %v844 = vunpack.c.l.b16 %v776
    %v845 = vunpack.c.l.b16 %v777
    %v846 = vunpack.c.l.b16 %v778
    %v847 = vunpack.c.l.b16 %v779
    %v848 = vunpack.c.l.b16 %v780
    %v849 = vunpack.c.l.b16 %v781
    %v850 = vunpack.c.l.b16 %v782
    %v851 = vunpack.c.l.b16 %v783
    %v852 = vunpack.c.l.b16 %v784
    %v853 = vunpack.c.l.b16 %v785
    %v854 = vunpack.c.l.b16 %v786
    %v855 = vpack.c.b16 %v824, %v823
    %v856 = vpack.c.b16 %v826, %v825
    %v857 = vpack.c.b16 %v828, %v827
    %v858 = vpack.c.b16 %v830, %v829
    %v859 = vpack.c.b16 %v832, %v831
    %v860 = vpack.c.b16 %v834, %v833
    %v861 = vpack.c.b16 %v836, %v835
    %v862 = vpack.c.b16 %v838, %v837
    %v863 = vpack.c.b16 %v840, %v839
    %v864 = vpack.c.b16 %v842, %v841
    %v865 = vpack.c.b16 %v844, %v843
    %v866 = vpack.c.b16 %v846, %v845
    %v867 = vpack.c.b16 %v848, %v847
    %v868 = vpack.c.b16 %v850, %v849
    %v869 = vpack.c.b16 %v852, %v851
    %v870 = vpack.c.b16 %v854, %v853
    %887 = vmatpush.bf16.msra.mxu0 %v862
    %888 = vmatpush.bf16.msra.mxu0 %v861
    %889 = vmatpush.bf16.msra.mxu0 %v860
    %890 = vmatpush.bf16.msra.mxu0 %v859
    %891 = vmatpush.bf16.msra.mxu0 %v858
    %892 = vmatpush.bf16.msra.mxu0 %v857
    %893 = vmatpush.bf16.msra.mxu0 %v856
    %894 = vmatpush.bf16.msra.mxu0 %v855
    %895 = vmatmul.bf16.gmra.mxu0 %v723
    %v896 = vpop.f32.mrf.mxu0
    %v897 = vadd.f32 %v789, %v896
    %v898 = vpop.f32.mrf.mxu0
    %v899 = vadd.f32 %v789, %v898
    %900 = vmatmul.bf16.gmra.mxu0 %v725
    %v901 = vpop.f32.mrf.mxu0
    %v902 = vadd.f32 %v789, %v901
    %v903 = vpop.f32.mrf.mxu0
    %v904 = vadd.f32 %v789, %v903
    %905 = vmatmul.bf16.gmra.mxu0 %v727
    %v906 = vpop.f32.mrf.mxu0
    %v907 = vadd.f32 %v789, %v906
    %v908 = vpop.f32.mrf.mxu0
    %v909 = vadd.f32 %v789, %v908
    %910 = vmatmul.bf16.gmra.mxu0 %v729
    %v911 = vpop.f32.mrf.mxu0
    %v912 = vadd.f32 %v789, %v911
    %v913 = vpop.f32.mrf.mxu0
    %v914 = vadd.f32 %v789, %v913
    %915 = vmatmul.bf16.gmra.mxu0 %v731
    %v916 = vpop.f32.mrf.mxu0
    %v917 = vadd.f32 %v789, %v916
    %v918 = vpop.f32.mrf.mxu0
    %v919 = vadd.f32 %v789, %v918
    %920 = vmatmul.bf16.gmra.mxu0 %v733
    %v921 = vpop.f32.mrf.mxu0
    %v922 = vadd.f32 %v789, %v921
    %v923 = vpop.f32.mrf.mxu0
    %v924 = vadd.f32 %v789, %v923
    %925 = vmatmul.bf16.gmra.mxu0 %v735
    %v926 = vpop.f32.mrf.mxu0
    %v927 = vadd.f32 %v789, %v926
    %v928 = vpop.f32.mrf.mxu0
    %v929 = vadd.f32 %v789, %v928
    %930 = vmatmul.bf16.gmra.mxu0 %v737
    %v931 = vpop.f32.mrf.mxu0
    %v932 = vadd.f32 %v789, %v931
    %v933 = vpop.f32.mrf.mxu0
    %v934 = vadd.f32 %v789, %v933
    %935 = vmatmul.bf16.gmra.mxu0 %v739
    %v936 = vpop.f32.mrf.mxu0
    %v937 = vadd.f32 %v789, %v936
    %v938 = vpop.f32.mrf.mxu0
    %v939 = vadd.f32 %v789, %v938
    %940 = vmatmul.bf16.gmra.mxu0 %v741
    %v941 = vpop.f32.mrf.mxu0
    %v942 = vadd.f32 %v789, %v941
    %v943 = vpop.f32.mrf.mxu0
    %v944 = vadd.f32 %v789, %v943
    %945 = vmatmul.bf16.gmra.mxu0 %v743
    %v946 = vpop.f32.mrf.mxu0
    %v947 = vadd.f32 %v789, %v946
    %v948 = vpop.f32.mrf.mxu0
    %v949 = vadd.f32 %v789, %v948
    %950 = vmatmul.bf16.gmra.mxu0 %v745
    %v951 = vpop.f32.mrf.mxu0
    %v952 = vadd.f32 %v789, %v951
    %v953 = vpop.f32.mrf.mxu0
    %v954 = vadd.f32 %v789, %v953
    %955 = vmatmul.bf16.gmra.mxu0 %v747
    %v956 = vpop.f32.mrf.mxu0
    %v957 = vadd.f32 %v789, %v956
    %v958 = vpop.f32.mrf.mxu0
    %v959 = vadd.f32 %v789, %v958
    %960 = vmatmul.bf16.gmra.mxu0 %v749
    %v961 = vpop.f32.mrf.mxu0
    %v962 = vadd.f32 %v789, %v961
    %v963 = vpop.f32.mrf.mxu0
    %v964 = vadd.f32 %v789, %v963
    %965 = vmatmul.bf16.gmra.mxu0 %v751
    %v966 = vpop.f32.mrf.mxu0
    %v967 = vadd.f32 %v789, %v966
    %v968 = vpop.f32.mrf.mxu0
    %v969 = vadd.f32 %v789, %v968
    %970 = vmatmul.bf16.gmra.mxu0 %v753
    %v971 = vpop.f32.mrf.mxu0
    %v972 = vadd.f32 %v789, %v971
    %v973 = vpop.f32.mrf.mxu0
    %v974 = vadd.f32 %v789, %v973
    %975 = vdwg.mxu0
    %976 = vmatpush.bf16.msra.mxu0 %v870
    %977 = vmatpush.bf16.msra.mxu0 %v869
    %978 = vmatpush.bf16.msra.mxu0 %v868
    %979 = vmatpush.bf16.msra.mxu0 %v867
    %980 = vmatpush.bf16.msra.mxu0 %v866
    %981 = vmatpush.bf16.msra.mxu0 %v865
    %982 = vmatpush.bf16.msra.mxu0 %v864
    %983 = vmatpush.bf16.msra.mxu0 %v863
    %984 = vmatmul.bf16.gmra.mxu0 %v724
    %v985 = vpop.f32.mrf.mxu0
    %v986 = vadd.f32 %v897, %v985
    %v987 = vpop.f32.mrf.mxu0
    %v988 = vadd.f32 %v899, %v987
    %989 = vmatmul.bf16.gmra.mxu0 %v726
    %v990 = vpop.f32.mrf.mxu0
    %v991 = vadd.f32 %v902, %v990
    %v992 = vpop.f32.mrf.mxu0
    %v993 = vadd.f32 %v904, %v992
    %994 = vmatmul.bf16.gmra.mxu0 %v728
    %v995 = vpop.f32.mrf.mxu0
    %v996 = vadd.f32 %v907, %v995
    %v997 = vpop.f32.mrf.mxu0
    %v998 = vadd.f32 %v909, %v997
    %999 = vmatmul.bf16.gmra.mxu0 %v730
    %v1000 = vpop.f32.mrf.mxu0
    %v1001 = vadd.f32 %v912, %v1000
    %v1002 = vpop.f32.mrf.mxu0
    %v1003 = vadd.f32 %v914, %v1002
    %1004 = vmatmul.bf16.gmra.mxu0 %v732
    %v1005 = vpop.f32.mrf.mxu0
    %v1006 = vadd.f32 %v917, %v1005
    %v1007 = vpop.f32.mrf.mxu0
    %v1008 = vadd.f32 %v919, %v1007
    %1009 = vmatmul.bf16.gmra.mxu0 %v734
    %v1010 = vpop.f32.mrf.mxu0
    %v1011 = vadd.f32 %v922, %v1010
    %v1012 = vpop.f32.mrf.mxu0
    %v1013 = vadd.f32 %v924, %v1012
    %1014 = vmatmul.bf16.gmra.mxu0 %v736
    %v1015 = vpop.f32.mrf.mxu0
    %v1016 = vadd.f32 %v927, %v1015
    %v1017 = vpop.f32.mrf.mxu0
    %v1018 = vadd.f32 %v929, %v1017
    %1019 = vmatmul.bf16.gmra.mxu0 %v738
    %v1020 = vpop.f32.mrf.mxu0
    %v1021 = vadd.f32 %v932, %v1020
    %v1022 = vpop.f32.mrf.mxu0
    %v1023 = vadd.f32 %v934, %v1022
    %1024 = vmatmul.bf16.gmra.mxu0 %v740
    %v1025 = vpop.f32.mrf.mxu0
    %v1026 = vadd.f32 %v937, %v1025
    %v1027 = vpop.f32.mrf.mxu0
    %v1028 = vadd.f32 %v939, %v1027
    %1029 = vmatmul.bf16.gmra.mxu0 %v742
    %v1030 = vpop.f32.mrf.mxu0
    %v1031 = vadd.f32 %v942, %v1030
    %v1032 = vpop.f32.mrf.mxu0
    %v1033 = vadd.f32 %v944, %v1032
    %1034 = vmatmul.bf16.gmra.mxu0 %v744
    %v1035 = vpop.f32.mrf.mxu0
    %v1036 = vadd.f32 %v947, %v1035
    %v1037 = vpop.f32.mrf.mxu0
    %v1038 = vadd.f32 %v949, %v1037
    %1039 = vmatmul.bf16.gmra.mxu0 %v746
    %v1040 = vpop.f32.mrf.mxu0
    %v1041 = vadd.f32 %v952, %v1040
    %v1042 = vpop.f32.mrf.mxu0
    %v1043 = vadd.f32 %v954, %v1042
    %1044 = vmatmul.bf16.gmra.mxu0 %v748
    %v1045 = vpop.f32.mrf.mxu0
    %v1046 = vadd.f32 %v957, %v1045
    %v1047 = vpop.f32.mrf.mxu0
    %v1048 = vadd.f32 %v959, %v1047
    %1049 = vmatmul.bf16.gmra.mxu0 %v750
    %v1050 = vpop.f32.mrf.mxu0
    %v1051 = vadd.f32 %v962, %v1050
    %v1052 = vpop.f32.mrf.mxu0
    %v1053 = vadd.f32 %v964, %v1052
    %1054 = vmatmul.bf16.gmra.mxu0 %v752
    %v1055 = vpop.f32.mrf.mxu0
    %v1056 = vadd.f32 %v967, %v1055
    %v1057 = vpop.f32.mrf.mxu0
    %v1058 = vadd.f32 %v969, %v1057
    %1059 = vmatmul.bf16.gmra.mxu0 %v754
    %v1060 = vpop.f32.mrf.mxu0
    %v1061 = vadd.f32 %v972, %v1060
    %v1062 = vpop.f32.mrf.mxu0
    %v1063 = vadd.f32 %v974, %v1062
    %1064 = vdwg.mxu0
    %v1065 = vmax.f32 %v986, 0.0
    %v1066 = vmax.f32 %v988, 0.0
    %v1067 = vmax.f32 %v991, 0.0
    %v1068 = vmax.f32 %v993, 0.0
    %v1069 = vmax.f32 %v996, 0.0
    %v1070 = vmax.f32 %v998, 0.0
    %v1071 = vmax.f32 %v1001, 0.0
    %v1072 = vmax.f32 %v1003, 0.0
    %v1073 = vmax.f32 %v1006, 0.0
    %v1074 = vmax.f32 %v1008, 0.0
    %v1075 = vmax.f32 %v1011, 0.0
    %v1076 = vmax.f32 %v1013, 0.0
    %v1077 = vmax.f32 %v1016, 0.0
    %v1078 = vmax.f32 %v1018, 0.0
    %v1079 = vmax.f32 %v1021, 0.0
    %v1080 = vmax.f32 %v1023, 0.0
    %v1081 = vmax.f32 %v1026, 0.0
    %v1082 = vmax.f32 %v1028, 0.0
    %v1083 = vmax.f32 %v1031, 0.0
    %v1084 = vmax.f32 %v1033, 0.0
    %v1085 = vmax.f32 %v1036, 0.0
    %v1086 = vmax.f32 %v1038, 0.0
    %v1087 = vmax.f32 %v1041, 0.0
    %v1088 = vmax.f32 %v1043, 0.0
    %v1089 = vmax.f32 %v1046, 0.0
    %v1090 = vmax.f32 %v1048, 0.0
    %v1091 = vmax.f32 %v1051, 0.0
    %v1092 = vmax.f32 %v1053, 0.0
    %v1093 = vmax.f32 %v1056, 0.0
    %v1094 = vmax.f32 %v1058, 0.0
    %v1095 = vmax.f32 %v1061, 0.0
    %v1096 = vmax.f32 %v1063, 0.0
    %v1097 = vpack.c.bf16 %v1066, %v1065
    %v1098 = vpack.c.bf16 %v1068, %v1067
    %v1099 = vpack.c.bf16 %v1070, %v1069
    %v1100 = vpack.c.bf16 %v1072, %v1071
    %v1101 = vpack.c.bf16 %v1074, %v1073
    %v1102 = vpack.c.bf16 %v1076, %v1075
    %v1103 = vpack.c.bf16 %v1078, %v1077
    %v1104 = vpack.c.bf16 %v1080, %v1079
    %v1105 = vpack.c.bf16 %v1082, %v1081
    %v1106 = vpack.c.bf16 %v1084, %v1083
    %v1107 = vpack.c.bf16 %v1086, %v1085
    %v1108 = vpack.c.bf16 %v1088, %v1087
    %v1109 = vpack.c.bf16 %v1090, %v1089
    %v1110 = vpack.c.bf16 %v1092, %v1091
    %v1111 = vpack.c.bf16 %v1094, %v1093
    %v1112 = vpack.c.bf16 %v1096, %v1095
    %v1113 = vld [vmem:[%s5] sm:$0xf]
    %v1114 = vld [vmem:[%s5 + $0x4] sm:$0xf]
    %v1115 = vld [vmem:[%s5 + $0x8] sm:$0xf]
    %v1116 = vld [vmem:[%s5 + $0xc] sm:$0xf]
    %v1117 = vld [vmem:[%s5 + $0x10] sm:$0xf]
    %v1118 = vld [vmem:[%s5 + $0x14] sm:$0xf]
    %v1119 = vld [vmem:[%s5 + $0x18] sm:$0xf]
    %v1120 = vld [vmem:[%s5 + $0x1c] sm:$0xf]
    %v1121 = vld [vmem:[%s5 + $0x20] sm:$0xf]
    %v1122 = vld [vmem:[%s5 + $0x24] sm:$0xf]
    %v1123 = vld [vmem:[%s5 + $0x28] sm:$0xf]
    %v1124 = vld [vmem:[%s5 + $0x2c] sm:$0xf]
    %v1125 = vld [vmem:[%s5 + $0x30] sm:$0xf]
    %v1126 = vld [vmem:[%s5 + $0x34] sm:$0xf]
    %v1127 = vld [vmem:[%s5 + $0x38] sm:$0xf]
    %v1128 = vld [vmem:[%s5 + $0x3c] sm:$0xf]
    %v1129 = vld [vmem:[%s6] sm:$0x1]
    %v1131 = vperm.slane %v1129, 0
    %v1149 = vunpack.c.l.b16 %v1113
    %v1150 = vunpack.c.l.b16 %v1114
    %v1151 = vunpack.c.l.b16 %v1115
    %v1152 = vunpack.c.l.b16 %v1116
    %v1153 = vunpack.c.l.b16 %v1117
    %v1154 = vunpack.c.l.b16 %v1118
    %v1155 = vunpack.c.l.b16 %v1119
    %v1156 = vunpack.c.l.b16 %v1120
    %v1157 = vunpack.c.l.b16 %v1121
    %v1158 = vunpack.c.l.b16 %v1122
    %v1159 = vunpack.c.l.b16 %v1123
    %v1160 = vunpack.c.l.b16 %v1124
    %v1161 = vunpack.c.l.b16 %v1125
    %v1162 = vunpack.c.l.b16 %v1126
    %v1163 = vunpack.c.l.b16 %v1127
    %v1164 = vunpack.c.l.b16 %v1128
    %v1165 = vpack.c.b16 %v1150, %v1149
    %v1166 = vpack.c.b16 %v1152, %v1151
    %v1167 = vpack.c.b16 %v1154, %v1153
    %v1168 = vpack.c.b16 %v1156, %v1155
    %v1169 = vpack.c.b16 %v1158, %v1157
    %v1170 = vpack.c.b16 %v1160, %v1159
    %v1171 = vpack.c.b16 %v1162, %v1161
    %v1172 = vpack.c.b16 %v1164, %v1163
    %1181 = vmatpush.bf16.msra.mxu0 %v1172
    %1182 = vmatpush.bf16.msra.mxu0 %v1171
    %1183 = vmatpush.bf16.msra.mxu0 %v1170
    %1184 = vmatpush.bf16.msra.mxu0 %v1169
    %1185 = vmatpush.bf16.msra.mxu0 %v1168
    %1186 = vmatpush.bf16.msra.mxu0 %v1167
    %1187 = vmatpush.bf16.msra.mxu0 %v1166
    %1188 = vmatpush.bf16.msra.mxu0 %v1165
    %1189 = vmatmul.bf16.gmra.mxu0 %v1097
    %v1190 = vpop.f32.mrf.mxu0
    %v1191 = vadd.f32 %v1131, %v1190
    %v1192 = vpop.f32.mrf.mxu0
    %v1193 = vadd.f32 %v1131, %v1192
    %1194 = vmatmul.bf16.gmra.mxu0 %v1098
    %v1195 = vpop.f32.mrf.mxu0
    %v1196 = vadd.f32 %v1131, %v1195
    %v1197 = vpop.f32.mrf.mxu0
    %v1198 = vadd.f32 %v1131, %v1197
    %1199 = vmatmul.bf16.gmra.mxu0 %v1099
    %v1200 = vpop.f32.mrf.mxu0
    %v1201 = vadd.f32 %v1131, %v1200
    %v1202 = vpop.f32.mrf.mxu0
    %v1203 = vadd.f32 %v1131, %v1202
    %1204 = vmatmul.bf16.gmra.mxu0 %v1100
    %v1205 = vpop.f32.mrf.mxu0
    %v1206 = vadd.f32 %v1131, %v1205
    %v1207 = vpop.f32.mrf.mxu0
    %v1208 = vadd.f32 %v1131, %v1207
    %1209 = vmatmul.bf16.gmra.mxu0 %v1101
    %v1210 = vpop.f32.mrf.mxu0
    %v1211 = vadd.f32 %v1131, %v1210
    %v1212 = vpop.f32.mrf.mxu0
    %v1213 = vadd.f32 %v1131, %v1212
    %1214 = vmatmul.bf16.gmra.mxu0 %v1102
    %v1215 = vpop.f32.mrf.mxu0
    %v1216 = vadd.f32 %v1131, %v1215
    %v1217 = vpop.f32.mrf.mxu0
    %v1218 = vadd.f32 %v1131, %v1217
    %1219 = vmatmul.bf16.gmra.mxu0 %v1103
    %v1220 = vpop.f32.mrf.mxu0
    %v1221 = vadd.f32 %v1131, %v1220
    %v1222 = vpop.f32.mrf.mxu0
    %v1223 = vadd.f32 %v1131, %v1222
    %1224 = vmatmul.bf16.gmra.mxu0 %v1104
    %v1225 = vpop.f32.mrf.mxu0
    %v1226 = vadd.f32 %v1131, %v1225
    %v1227 = vpop.f32.mrf.mxu0
    %v1228 = vadd.f32 %v1131, %v1227
    %1229 = vmatmul.bf16.gmra.mxu0 %v1105
    %v1230 = vpop.f32.mrf.mxu0
    %v1231 = vadd.f32 %v1131, %v1230
    %v1232 = vpop.f32.mrf.mxu0
    %v1233 = vadd.f32 %v1131, %v1232
    %1234 = vmatmul.bf16.gmra.mxu0 %v1106
    %v1235 = vpop.f32.mrf.mxu0
    %v1236 = vadd.f32 %v1131, %v1235
    %v1237 = vpop.f32.mrf.mxu0
    %v1238 = vadd.f32 %v1131, %v1237
    %1239 = vmatmul.bf16.gmra.mxu0 %v1107
    %v1240 = vpop.f32.mrf.mxu0
    %v1241 = vadd.f32 %v1131, %v1240
    %v1242 = vpop.f32.mrf.mxu0
    %v1243 = vadd.f32 %v1131, %v1242
    %1244 = vmatmul.bf16.gmra.mxu0 %v1108
    %v1245 = vpop.f32.mrf.mxu0
    %v1246 = vadd.f32 %v1131, %v1245
    %v1247 = vpop.f32.mrf.mxu0
    %v1248 = vadd.f32 %v1131, %v1247
    %1249 = vmatmul.bf16.gmra.mxu0 %v1109
    %v1250 = vpop.f32.mrf.mxu0
    %v1251 = vadd.f32 %v1131, %v1250
    %v1252 = vpop.f32.mrf.mxu0
    %v1253 = vadd.f32 %v1131, %v1252
    %1254 = vmatmul.bf16.gmra.mxu0 %v1110
    %v1255 = vpop.f32.mrf.mxu0
    %v1256 = vadd.f32 %v1131, %v1255
    %v1257 = vpop.f32.mrf.mxu0
    %v1258 = vadd.f32 %v1131, %v1257
    %1259 = vmatmul.bf16.gmra.mxu0 %v1111
    %v1260 = vpop.f32.mrf.mxu0
    %v1261 = vadd.f32 %v1131, %v1260
    %v1262 = vpop.f32.mrf.mxu0
    %v1263 = vadd.f32 %v1131, %v1262
    %1264 = vmatmul.bf16.gmra.mxu0 %v1112
    %v1265 = vpop.f32.mrf.mxu0
    %v1266 = vadd.f32 %v1131, %v1265
    %v1267 = vpop.f32.mrf.mxu0
    %v1268 = vadd.f32 %v1131, %v1267
    %1269 = vdwg.mxu0
    %1270 = vst [vmem:[#allocation2] sm:$0xff] %v1191
    %1271 = vst [vmem:[#allocation2 + $0x8] sm:$0xff] %v1193
    %1272 = vst [vmem:[#allocation2 + $0x10] sm:$0xff] %v1196
    %1273 = vst [vmem:[#allocation2 + $0x18] sm:$0xff] %v1198
    %1274 = vst [vmem:[#allocation2 + $0x20] sm:$0xff] %v1201
    %1275 = vst [vmem:[#allocation2 + $0x28] sm:$0xff] %v1203
    %1276 = vst [vmem:[#allocation2 + $0x30] sm:$0xff] %v1206
    %1277 = vst [vmem:[#allocation2 + $0x38] sm:$0xff] %v1208
    %1278 = vst [vmem:[#allocation2 + $0x40] sm:$0xff] %v1211
    %1279 = vst [vmem:[#allocation2 + $0x48] sm:$0xff] %v1213
    %1280 = vst [vmem:[#allocation2 + $0x50] sm:$0xff] %v1216
    %1281 = vst [vmem:[#allocation2 + $0x58] sm:$0xff] %v1218
    %1282 = vst [vmem:[#allocation2 + $0x60] sm:$0xff] %v1221
    %1283 = vst [vmem:[#allocation2 + $0x68] sm:$0xff] %v1223
    %1284 = vst [vmem:[#allocation2 + $0x70] sm:$0xff] %v1226
    %1285 = vst [vmem:[#allocation2 + $0x78] sm:$0xff] %v1228
    %1286 = vst [vmem:[#allocation2 + $0x80] sm:$0xff] %v1231
    %1287 = vst [vmem:[#allocation2 + $0x88] sm:$0xff] %v1233
    %1288 = vst [vmem:[#allocation2 + $0x90] sm:$0xff] %v1236
    %1289 = vst [vmem:[#allocation2 + $0x98] sm:$0xff] %v1238
    %1290 = vst [vmem:[#allocation2 + $0xa0] sm:$0xff] %v1241
    %1291 = vst [vmem:[#allocation2 + $0xa8] sm:$0xff] %v1243
    %1292 = vst [vmem:[#allocation2 + $0xb0] sm:$0xff] %v1246
    %1293 = vst [vmem:[#allocation2 + $0xb8] sm:$0xff] %v1248
    %1294 = vst [vmem:[#allocation2 + $0xc0] sm:$0xff] %v1251
    %1295 = vst [vmem:[#allocation2 + $0xc8] sm:$0xff] %v1253
    %1296 = vst [vmem:[#allocation2 + $0xd0] sm:$0xff] %v1256
    %1297 = vst [vmem:[#allocation2 + $0xd8] sm:$0xff] %v1258
    %1298 = vst [vmem:[#allocation2 + $0xe0] sm:$0xff] %v1261
    %1299 = vst [vmem:[#allocation2 + $0xe8] sm:$0xff] %v1263
    %1300 = vst [vmem:[#allocation2 + $0xf0] sm:$0xff] %v1266
    %1301 = vst [vmem:[#allocation2 + $0xf8] sm:$0xff] %v1268
    // Predicated region
    $region30: #{_lambda_.1} parent=1 // pred_check
      _
    $region31: #{_lambda_.1} parent=1 // pred_check_branch
      %1303 = sbr.rel (0) target = $region33
    $region32: #{_lambda_.1} parent=1 // pred_region
      %1305 = vsyncadd [#allocation3], 0
      %s1306 = sshll.u32 [#allocation2], 4
      %s1307 = int_to_ptr.vmem [resolvable:$true] %s1306
      %s1308 = sshll.u32 %s7, 4
      %s1309 = int_to_ptr.hbm [resolvable:$true] %s1308
      %1314 = dma.vmem_to_hbm [thread:$0]  %s1307, 4096, %s1309, [#allocation3], 128, 128, 8
    $region33: #{_lambda_.1} parent=1 // pred_fallthru
      _
    // Predicated region
    $region34: #{_lambda_.1} parent=1 // pred_check
      _
    $region35: #{_lambda_.1} parent=1 // pred_check_branch
      %1316 = sbr.rel (0) target = $region37
    $region36: #{_lambda_.1} parent=1 // pred_region
      %1318 = dma.done [#allocation3], 4096
    $region37: #{_lambda_.1} parent=1 // pred_fallthru
      _
    %1319 = vsyncpa [#allocation3], 1

</llo_original>
